<compile_context>
chip_gen: v7x
topology: tpu7x:2x2x1
jax: 0.10.0
libtpu: 0.0.40
codegen_flags: <defaults>
</compile_context>

<pallas_src>
import math
from functools import lru_cache

import jax
import jax.numpy as jnp
from jax.experimental import pallas as pl
from jax.experimental.pallas import tpu as pltpu


# ----------------------------------------------------------------------------
# Pallas kernel: back-projection contraction  out[M, N] = p[M, K] @ A[K, N]
# Grid = (N // tn, K // tk).  Output block index is constant along the last
# ("arbitrary") K axis -> the f32 output tile stays resident in VMEM and is
# accumulated directly (no scratch accumulator, no finalize copy).
# ----------------------------------------------------------------------------
def _make_backproj_kernel(p_resident):
    def kernel(p_ref, a_ref, o_ref):
        @pl.when(pl.program_id(1) == 0)
        def _init():
            o_ref[...] = jnp.zeros_like(o_ref)

        if p_resident:
            # proj is fully VMEM-resident as (K_tiles, M_pad, tk); pick the
            # k-th slab (dynamic leading-axis index — no lane-dim dyn slice).
            p_blk = p_ref[pl.program_id(1)]
        else:
            p_blk = p_ref[...]

        o_ref[...] += jnp.dot(
            p_blk, a_ref[...], preferred_element_type=jnp.float32
        )

    return kernel


# ----------------------------------------------------------------------------
# Plain-JAX glue: parallel-beam system matrix A[ray, pixel], built once per
# geometry at its PADDED shape, cached as bf16.
# ----------------------------------------------------------------------------
def _build_system_matrix_f32(H, W, views, dets, dImg, dDet, ang0, dAng,
                             K_pad, N_pad):
    nsamp = 2 * max(H, W)                       # samples along each ray
    L = 1.5 * max(H, W) * dImg                  # ray length covering the image
    s = jnp.linspace(-0.5 * L, 0.5 * L, nsamp, dtype=jnp.float32)
    ds = L / (nsamp - 1)

    angles = ang0 + dAng * jnp.arange(views, dtype=jnp.float32)
    t = (jnp.arange(dets, dtype=jnp.float32) - (dets - 1) / 2.0) * dDet

    cos = jnp.cos(angles)[:, None, None]        # (V,1,1)
    sin = jnp.sin(angles)[:, None, None]
    tt = t[None, :, None]                       # (1,D,1)
    ss = s[None, None, :]                       # (1,1,S)

    # world coords of sample points along each ray
    xs = tt * cos - ss * sin                    # (V,D,S)
    ys = tt * sin + ss * cos

    # world -> fractional pixel coords (x -> column, y -> row, y flipped)
    fx = xs / dImg + (W - 1) / 2.0
    fy = (H - 1) / 2.0 - ys / dImg

    x0 = jnp.floor(fx)
    y0 = jnp.floor(fy)
    wx = fx - x0
    wy = fy - y0
    x0i = x0.astype(jnp.int32)
    y0i = y0.astype(jnp.int32)

    n_rays = views * dets
    ray_idx = jnp.arange(n_rays, dtype=jnp.int32).reshape(views, dets, 1)
    ray_idx = jnp.broadcast_to(ray_idx, (views, dets, nsamp)).reshape(-1)

    # Built at the padded shape: indices only touch [0, n_rays) x [0, H*W),
    # so padding rows/cols stay exactly zero (numerically exact).
    A = jnp.zeros((K_pad, N_pad), dtype=jnp.float32)
    corners = [
        (0, 0, (1 - wy) * (1 - wx)),
        (0, 1, (1 - wy) * wx),
        (1, 0, wy * (1 - wx)),
        (1, 1, wy * wx),
    ]
    for dy, dx, wgt in corners:
        xi = x0i + dx
        yi = y0i + dy
        valid = (xi >= 0) & (xi < W) & (yi >= 0) & (yi < H)
        xi_c = jnp.clip(xi, 0, W - 1)
        yi_c = jnp.clip(yi, 0, H - 1)
        contrib = (jnp.where(valid, wgt, 0.0) * ds).reshape(-1)   # (V*D*S,)
        pix = (yi_c * W + xi_c).reshape(-1)                       # (V*D*S,)
        A = A.at[ray_idx, pix].add(contrib)                       # scatter-add
    return A


@lru_cache(maxsize=8)
def _system_matrix_bf16_padded(H, W, views, dets, dImg, dDet, ang0, dAng,
                               K_pad, N_pad):
    # Cache the *padded bf16* A so there is no per-call cast/pad pass over the
    # largest array in the problem.
    A = _build_system_matrix_f32(H, W, views, dets, dImg, dDet, ang0, dAng,
                                 K_pad, N_pad)
    return jax.device_put(A.astype(jnp.bfloat16))


def _round_up(x, m):
    return ((x + m - 1) // m) * m


# ----------------------------------------------------------------------------
# projector_t.forward(proj, options) equivalent (back-projection).
# ----------------------------------------------------------------------------
def projector_t_forward(proj, options):
    B, C, V, D = proj.shape
    assert V == int(options["views"]) and D == int(options["dets"])
    H = int(options["height"])
    W = int(options["width"])

    M = B * C
    K = V * D        # reduction (rays)
    N = H * W        # output (pixels)

    # --- Tile selection: pick tile first, pad dims up to a multiple of it. ---
    # v7x-safe config (64 MiB physical VMEM): A block up to 1024x4096 bf16
    # = 8 MiB -> 16 MiB double-buffered; also near-roofline on v5e/v6e.
    K_natural = _round_up(K, 128)
    N_natural = _round_up(N, 128)
    tk = min(1024, K_natural)
    tn = min(4096, N_natural)
    K_pad = _round_up(K, tk)
    N_pad = _round_up(N, tn)

    # v7x megacore: prefer an even number of n-tiles when there is more than
    # one, so both TensorCores get balanced halves of the A stream.
    n_tiles = N_pad // tn
    if n_tiles > 1 and n_tiles % 2 == 1 and tn >= 256:
        tn //= 2
        N_pad = _round_up(N, tn)

    # bf16 LHS: pad M to a multiple of 16 (full bf16 vreg sublane packing).
    M_pad = max(16, _round_up(M, 16))

    K_tiles = K_pad // tk
    N_tiles = N_pad // tn

    # Padded bf16 A, cached per geometry + pad shape (no per-call prep pass).
    A_b = _system_matrix_bf16_padded(
        H, W, V, D,
        float(options["dImg"]), float(options["dDet"]),
        float(options["Ang0"]), float(options["dAng"]),
        K_pad, N_pad,
    )  # (K_pad, N_pad) bfloat16

    # proj -> bf16, padded. Keep it fully VMEM-resident when small.
    x = proj.reshape(M, K).astype(jnp.bfloat16)
    x = jnp.pad(x, ((0, M_pad - M), (0, K_pad - K)))
    p_bytes = M_pad * K_pad * 2
    p_resident = p_bytes <= 4 * 1024 * 1024

    if p_resident:
        # (K_tiles, M_pad, tk) slab, constant index_map -> DMA'd once.
        x_in = x.reshape(M_pad, K_tiles, tk).transpose(1, 0, 2)
        p_spec = pl.BlockSpec((K_tiles, M_pad, tk), lambda n, k: (0, 0, 0))
        p_buf_bytes = 2 * p_bytes
    else:
        x_in = x
        p_spec = pl.BlockSpec((M_pad, tk), lambda n, k: (0, k))
        p_buf_bytes = 2 * M_pad * tk * 2

    # Double-buffered VMEM footprint -> explicit scoped-VMEM budget.
    a_buf_bytes = 2 * tk * tn * 2
    o_buf_bytes = 2 * M_pad * tn * 4
    footprint = p_buf_bytes + a_buf_bytes + o_buf_bytes
    vmem_limit = int(min(48 << 20, max(32 << 20, footprint + (12 << 20))))

    grid = (N_tiles, K_tiles)

    cost = pl.CostEstimate(
        flops=2 * M_pad * K_pad * N_pad,
        transcendentals=0,
        bytes_accessed=K_pad * N_pad * 2 + p_bytes + M_pad * N_pad * 4,
    )

    out = pl.pallas_call(
        _make_backproj_kernel(p_resident),
        out_shape=jax.ShapeDtypeStruct((M_pad, N_pad), jnp.float32),
        grid_spec=pltpu.PrefetchScalarGridSpec(
            num_scalar_prefetch=0,
            grid=grid,
            in_specs=[
                p_spec,
                # A stream: multi-MiB blocks already cover the per-step
                # latency -> default double buffering (no pl.Buffered(3)).
                pl.BlockSpec((tk, tn), lambda n, k: (k, n)),
            ],
            out_specs=pl.BlockSpec((M_pad, tn), lambda n, k: (0, n)),
        ),
        compiler_params=pltpu.CompilerParams(
            # N-tiles independent -> "parallel" (megacore split on v7x);
            # K is the reduction -> "arbitrary", kept as the last grid axis.
            dimension_semantics=("parallel", "arbitrary"),
            vmem_limit_bytes=vmem_limit,
        ),
        cost_estimate=cost,
    )(x_in, A_b)

    img = out[:M, :N].reshape(B, C, H, W)
    return img


if __name__ == "__main__":
    key = jax.random.PRNGKey(0)

    # Small shapes consistent with the LEARN projector_t: input sinogram
    # (B, C, views, dets) -> output image (B, C, H, W).
    B, C, H, W = 2, 1, 16, 16
    views, dets = 8, 16

    proj = jax.random.normal(key, (B, C, views, dets), dtype=jnp.float32)

    # Geometry options (static), analogous to the `options` tensor in ctlib.
    options = {
        "views": views, "dets": dets, "width": W, "height": H,
        "dImg": 1.0, "dDet": 1.0,
        "Ang0": 0.0, "dAng": math.pi / views,
        "s2r": 500.0, "d2r": 500.0, "binshift": 0.0, "scan_type": 0,
    }

    img = projector_t_forward(proj, options)
    jax.block_until_ready(img)

    assert img.shape == (B, C, H, W), img.shape
    assert img.dtype == jnp.float32

    # f32 reference check (generous tolerance: kernel streams bf16 inputs).
    A_f32 = _build_system_matrix_f32(
        H, W, views, dets,
        float(options["dImg"]), float(options["dDet"]),
        float(options["Ang0"]), float(options["dAng"]),
        views * dets, H * W,
    )
    ref = (proj.reshape(B * C, views * dets) @ A_f32).reshape(B, C, H, W)
    err = float(jnp.max(jnp.abs(img - ref)))
    tol = 5e-2 * max(1.0, float(jnp.max(jnp.abs(ref))))
    assert err <= tol, (err, tol)

    print("KERNEL_OK")
</pallas_src>

<mosaic_0001>
module attributes {stable_mosaic.version = 11 : i64} {
  func.func @kernel(%arg0: i32, %arg1: i32, %arg2: memref<1x16x128xbf16, #tpu.memory_space<vmem>>, %arg3: memref<128x256xbf16, #tpu.memory_space<vmem>>, %arg4: memref<16x256xf32, #tpu.memory_space<vmem>>) attributes {dimension_semantics = [#tpu.dimension_semantics<parallel>, #tpu.dimension_semantics<arbitrary>], iteration_bounds = array<i64: 1, 1>, scalar_prefetch = 0 : i64, scratch_operands = 0 : i64, tpu.core_type = #tpu.core_type<tc>, window_params = [{pipeline_mode = #tpu.pipeline_mode<synchronous>, transform_indices = @transform_0, window_bounds = array<i64: 1, 16, 128>}, {transform_indices = @transform_1, window_bounds = array<i64: 128, 256>}, {transform_indices = @transform_2, window_bounds = array<i64: 16, 256>}]} {
    %c0_i32 = arith.constant 0 : i32
    %0 = arith.cmpi eq, %arg1, %c0_i32 : i32
    %1 = arith.extui %0 : i1 to i32
    %c0_i32_0 = arith.constant 0 : i32
    %2 = arith.cmpi ne, %1, %c0_i32_0 : i32
    scf.if %2 {
      %cst_8 = arith.constant 0.000000e+00 : f32
      %11 = vector.broadcast %cst_8 : f32 to vector<16x256xf32>
      %c0_9 = arith.constant 0 : index
      %c0_10 = arith.constant 0 : index
      %12 = vector.load %arg4[%c0_9, %c0_10] : memref<16x256xf32, #tpu.memory_space<vmem>>, vector<16x256xf32>
      tpu.vector_store %arg4[%c0_9, %c0_10], %11 {strides = array<i32>} : memref<16x256xf32, #tpu.memory_space<vmem>>, vector<16x256xf32>,
    } else {
    }
    %3 = arith.index_cast %arg1 : i32 to index
    %c0 = arith.constant 0 : index
    %c0_1 = arith.constant 0 : index
    %4 = vector.load %arg2[%3, %c0, %c0_1] : memref<1x16x128xbf16, #tpu.memory_space<vmem>>, vector<1x16x128xbf16>
    %5 = vector.shape_cast %4 : vector<1x16x128xbf16> to vector<16x128xbf16>
    %c0_2 = arith.constant 0 : index
    %c0_3 = arith.constant 0 : index
    %6 = vector.load %arg4[%c0_2, %c0_3] : memref<16x256xf32, #tpu.memory_space<vmem>>, vector<16x256xf32>
    %c0_4 = arith.constant 0 : index
    %c0_5 = arith.constant 0 : index
    %7 = vector.load %arg3[%c0_4, %c0_5] : memref<128x256xbf16, #tpu.memory_space<vmem>>, vector<128x256xbf16>
    %cst = arith.constant dense<0.000000e+00> : vector<16x256xf32>
    %8 = tpu.matmul %5, %7, %cst {dimension_numbers = #tpu.dot_dimension_numbers<[1], [0], [0], [1], [0, 0, 1, 1], [], []>} : vector<16x128xbf16>, vector<128x256xbf16>, vector<16x256xf32> -> vector<16x256xf32>
    %9 = arith.addf %6, %8 : vector<16x256xf32>
    %c0_6 = arith.constant 0 : index
    %c0_7 = arith.constant 0 : index
    %10 = vector.load %arg4[%c0_6, %c0_7] : memref<16x256xf32, #tpu.memory_space<vmem>>, vector<16x256xf32>
    tpu.vector_store %arg4[%c0_6, %c0_7], %9 {strides = array<i32>} : memref<16x256xf32, #tpu.memory_space<vmem>>, vector<16x256xf32>,
    return
  }
  func.func @transform_0(%arg0: i32, %arg1: i32) -> (i32, i32, i32) {
    %c0_i32 = arith.constant 0 : i32
    %c0_i32_0 = arith.constant 0 : i32
    %c0_i32_1 = arith.constant 0 : i32
    %c0_i32_2 = arith.constant 0 : i32
    return %c0_i32, %c0_i32_0, %c0_i32_1 : i32, i32, i32
  }
  func.func @transform_1(%arg0: i32, %arg1: i32) -> (i32, i32) {
    %c0_i32 = arith.constant 0 : i32
    return %arg1, %arg0 : i32, i32
  }
  func.func @transform_2(%arg0: i32, %arg1: i32) -> (i32, i32) {
    %c0_i32 = arith.constant 0 : i32
    %c0_i32_0 = arith.constant 0 : i32
    return %c0_i32, %arg0 : i32, i32
  }
}

</mosaic_0001>

<llo_original>
// kernel: tpu_custom_call.1
$region0: #{tpu_custom_call.1}
  #allocation0 [shape = 'u32[]', space=smem, size = 0x4, offset = 0x4, fixed_abs, tag = 'smem constant byte address 0x4 - core index']
  #allocation1 [shape = 'u32[144,128]{1,0:T(1,128)}', space=vmem, size = 0x12000, scoped, tag = 'internal scratch']
  %s0 = inlined_call_operand.hbm [shape: bf16[1,16,128], index: 0, kind: input, shape index: {}]
  %s1 = inlined_call_operand.hbm [shape: bf16[128,256], index: 1, kind: input, shape index: {}]
  %s2 = inlined_call_operand.hbm [shape: f32[16,256], index: 2, kind: output, shape index: {}]
  %s3 = sld [smem:[#allocation0]]
  $region30: #{tpu_custom_call.1} parent=0
    _
  %s5 = ssub.s32 1, %s3
  %s6 = scalar_select 0, %s5, %s3
  $region1: #{tpu_custom_call.1} parent=0
    #allocation2 [shape = 'u8[4096]{0}', space=vmem, size = 0x1000, scoped, tag = 'input window, operand 0, single buffered']
    #allocation3 [shape = 's32[1]{0}', space=sflag, size = 0x4, scoped, tag = 'scoped memory for tpu_custom_call.1']
    #allocation4 [shape = 's32[1]{0}', space=sflag, size = 0x4, scoped, tag = 'scoped memory for tpu_custom_call.1']
    #allocation5 [shape = 'u8[65536]{0}', space=vmem, size = 0x10000, scoped, tag = 'input window, operand 1, single buffered']
    #allocation6 [shape = 's32[1]{0}', space=sflag, size = 0x4, scoped, tag = 'scoped memory for tpu_custom_call.1']
    #allocation7 [shape = 'u8[16384]{0}', space=vmem, size = 0x4000, scoped, tag = 'output window, operand 0, single buffered']
    %7 = vsyncpa [#allocation3], 0
    %8 = vsyncpa [#allocation6], 0
    %9 = vsyncpa [#allocation4], 0
    // Predicated region
    $region2: #{tpu_custom_call.1} parent=1 // pred_check
      _
    $region3: #{tpu_custom_call.1} parent=1 // pred_check_branch
      %11 = sbr.rel (0) target = $region5
    $region4: #{tpu_custom_call.1} parent=1 // pred_region
      %s13 = ssub.s32 128, 128
      %14 = vsyncadd [#allocation3], %s13
      %s15 = sshll.u32 [#allocation2], 4
      %s16 = int_to_ptr.vmem [resolvable:$true] %s15
      %21 = dma.hbm_to_vmem [thread:$0]  %s0, 128, %s16, [#allocation3], 64, 64, 4
    $region5: #{tpu_custom_call.1} parent=1 // pred_fallthru
      _
    // Predicated region
    $region6: #{tpu_custom_call.1} parent=1 // pred_check
      _
    $region7: #{tpu_custom_call.1} parent=1 // pred_check_branch
      %23 = sbr.rel (0) target = $region9
    $region8: #{tpu_custom_call.1} parent=1 // pred_region
      %s25 = ssub.s32 2048, 2048
      %26 = vsyncadd [#allocation6], %s25
      %s27 = sshll.u32 [#allocation5], 4
      %s28 = int_to_ptr.vmem [resolvable:$true] %s27
      %33 = dma.hbm_to_vmem [thread:$0]  %s1, 2048, %s28, [#allocation6], 128, 128, 8
    $region9: #{tpu_custom_call.1} parent=1 // pred_fallthru
      _
    // Predicated region
    $region10: #{tpu_custom_call.1} parent=1 // pred_check
      _
    $region11: #{tpu_custom_call.1} parent=1 // pred_check_branch
      %35 = sbr.rel (0) target = $region13
    $region12: #{tpu_custom_call.1} parent=1 // pred_region
      %36 = dma.done [#allocation3], 128
    $region13: #{tpu_custom_call.1} parent=1 // pred_fallthru
      _
    // Predicated region
    $region14: #{tpu_custom_call.1} parent=1 // pred_check
      _
    $region15: #{tpu_custom_call.1} parent=1 // pred_check_branch
      %38 = sbr.rel (0) target = $region17
    $region16: #{tpu_custom_call.1} parent=1 // pred_region
      %39 = dma.done [#allocation6], 2048
    $region17: #{tpu_custom_call.1} parent=1 // pred_fallthru
      _
    %p41 = scmp.eq.s32.totalorder 0, 0
    // Predicated region
    $region18: #{tpu_custom_call.1} parent=1 // pred_check
      %p42 = pneg %p41
    $region19: #{tpu_custom_call.1} parent=1 // pred_check_branch
      %44 = sbr.rel (%p42) target = $region21
    $region20: #{tpu_custom_call.1} parent=1 // pred_region
      %45 = vst [vmem:[#allocation7] sm:$0xff] 0.0
      %46 = vst [vmem:[#allocation7 + $0x8] sm:$0xff] 0.0
      %47 = vst [vmem:[#allocation7 + $0x10] sm:$0xff] 0.0
      %48 = vst [vmem:[#allocation7 + $0x18] sm:$0xff] 0.0
    $region21: #{tpu_custom_call.1} parent=1 // pred_fallthru
      _
    %s49 = smul.u32 0, 2
    %s50 = smul.addr %s49, 4
    %s51 = scalar_lea.vmem [#allocation2], %s50
    %v52 = vld [vmem:[%s51] sm:$0xf]
    %v53 = vld [vmem:[%s51 + $0x4] sm:$0xf]
    %v54 = vld [vmem:[#allocation7] sm:$0xff]
    %v55 = vld [vmem:[#allocation7 + $0x8] sm:$0xff]
    %v56 = vld [vmem:[#allocation7 + $0x10] sm:$0xff]
    %v57 = vld [vmem:[#allocation7 + $0x18] sm:$0xff]
    %v58 = vld [vmem:[#allocation5] sm:$0xff]
    %v59 = vld [vmem:[#allocation5 + $0x8] sm:$0xff]
    %v60 = vld [vmem:[#allocation5 + $0x10] sm:$0xff]
    %v61 = vld [vmem:[#allocation5 + $0x18] sm:$0xff]
    %v62 = vld [vmem:[#allocation5 + $0x20] sm:$0xff]
    %v63 = vld [vmem:[#allocation5 + $0x28] sm:$0xff]
    %v64 = vld [vmem:[#allocation5 + $0x30] sm:$0xff]
    %v65 = vld [vmem:[#allocation5 + $0x38] sm:$0xff]
    %v66 = vld [vmem:[#allocation5 + $0x40] sm:$0xff]
    %v67 = vld [vmem:[#allocation5 + $0x48] sm:$0xff]
    %v68 = vld [vmem:[#allocation5 + $0x50] sm:$0xff]
    %v69 = vld [vmem:[#allocation5 + $0x58] sm:$0xff]
    %v70 = vld [vmem:[#allocation5 + $0x60] sm:$0xff]
    %v71 = vld [vmem:[#allocation5 + $0x68] sm:$0xff]
    %v72 = vld [vmem:[#allocation5 + $0x70] sm:$0xff]
    %v73 = vld [vmem:[#allocation5 + $0x78] sm:$0xff]
    %v76 = vunpack.c.l.b16 %v52
    %v77 = vunpack.c.l.b16 %v53
    %v78 = vpack.c.b16 %v77, %v76
    %v96 = vunpack.c.l.b16 %v58
    %v97 = vunpack.c.h.b16 %v58
    %v98 = vunpack.c.l.b16 %v59
    %v99 = vunpack.c.h.b16 %v59
    %v100 = vunpack.c.l.b16 %v60
    %v101 = vunpack.c.h.b16 %v60
    %v102 = vunpack.c.l.b16 %v61
    %v103 = vunpack.c.h.b16 %v61
    %v104 = vunpack.c.l.b16 %v62
    %v105 = vunpack.c.h.b16 %v62
    %v106 = vunpack.c.l.b16 %v63
    %v107 = vunpack.c.h.b16 %v63
    %v108 = vunpack.c.l.b16 %v64
    %v109 = vunpack.c.h.b16 %v64
    %v110 = vunpack.c.l.b16 %v65
    %v111 = vunpack.c.h.b16 %v65
    %v112 = vunpack.c.l.b16 %v66
    %v113 = vunpack.c.h.b16 %v66
    %v114 = vunpack.c.l.b16 %v67
    %v115 = vunpack.c.h.b16 %v67
    %v116 = vunpack.c.l.b16 %v68
    %v117 = vunpack.c.h.b16 %v68
    %v118 = vunpack.c.l.b16 %v69
    %v119 = vunpack.c.h.b16 %v69
    %v120 = vunpack.c.l.b16 %v70
    %v121 = vunpack.c.h.b16 %v70
    %v122 = vunpack.c.l.b16 %v71
    %v123 = vunpack.c.h.b16 %v71
    %v124 = vunpack.c.l.b16 %v72
    %v125 = vunpack.c.h.b16 %v72
    %v126 = vunpack.c.l.b16 %v73
    %v127 = vunpack.c.h.b16 %v73
    %v128 = vpack.c.b16 %v98, %v96
    %v129 = vpack.c.b16 %v99, %v97
    %v130 = vpack.c.b16 %v102, %v100
    %v131 = vpack.c.b16 %v103, %v101
    %v132 = vpack.c.b16 %v106, %v104
    %v133 = vpack.c.b16 %v107, %v105
    %v134 = vpack.c.b16 %v110, %v108
    %v135 = vpack.c.b16 %v111, %v109
    %v136 = vpack.c.b16 %v114, %v112
    %v137 = vpack.c.b16 %v115, %v113
    %v138 = vpack.c.b16 %v118, %v116
    %v139 = vpack.c.b16 %v119, %v117
    %v140 = vpack.c.b16 %v122, %v120
    %v141 = vpack.c.b16 %v123, %v121
    %v142 = vpack.c.b16 %v126, %v124
    %v143 = vpack.c.b16 %v127, %v125
    %160 = vmatprep.subr.bf16.mxu0 %v129
    %161 = vmatpush1.bf16.msra.mxu0 %v128
    %162 = vmatprep.subr.bf16.mxu0 %v131
    %163 = vmatpush1.bf16.msra.mxu0 %v130
    %164 = vmatprep.subr.bf16.mxu0 %v133
    %165 = vmatpush1.bf16.msra.mxu0 %v132
    %166 = vmatprep.subr.bf16.mxu0 %v135
    %167 = vmatpush1.bf16.msra.mxu0 %v134
    %168 = vmatprep.subr.bf16.mxu0 %v137
    %169 = vmatpush1.bf16.msra.mxu0 %v136
    %170 = vmatprep.subr.bf16.mxu0 %v139
    %171 = vmatpush1.bf16.msra.mxu0 %v138
    %172 = vmatprep.subr.bf16.mxu0 %v141
    %173 = vmatpush1.bf16.msra.mxu0 %v140
    %174 = vmatprep.subr.bf16.mxu0 %v143
    %175 = vmatpush1.bf16.msra.mxu0 %v142
    %176 = vmatprep.subr.bf16.mxu0 0
    %177 = vmatpush1.bf16.msra.mxu0 0
    %178 = vmatprep.subr.bf16.mxu0 0
    %179 = vmatpush1.bf16.msra.mxu0 0
    %180 = vmatprep.subr.bf16.mxu0 0
    %181 = vmatpush1.bf16.msra.mxu0 0
    %182 = vmatprep.subr.bf16.mxu0 0
    %183 = vmatpush1.bf16.msra.mxu0 0
    %184 = vmatprep.subr.bf16.mxu0 0
    %185 = vmatpush1.bf16.msra.mxu0 0
    %186 = vmatprep.subr.bf16.mxu0 0
    %187 = vmatpush1.bf16.msra.mxu0 0
    %188 = vmatprep.subr.bf16.mxu0 0
    %189 = vmatpush1.bf16.msra.mxu0 0
    %190 = vmatprep.subr.bf16.mxu0 0
    %191 = vmatpush1.bf16.msra.mxu0 0
    %192 = vmatprep.mubr.bf16.mxu0 0
    %193 = vmatmul.mubr.bf16.gmra.mrb[0].mxu0 %v78
    %v194 = vpop.f32.mrb[0].mxu0
    %v195 = vadd.f32 0.0, %v194
    %v196 = vpop.f32.mrb[0].mxu0
    %v197 = vadd.f32 0.0, %v196
    %v198 = vpop.f32.mrb[0].mxu0
    %v199 = vadd.f32 0.0, %v198
    %v200 = vpop.f32.mrb[0].mxu0
    %v201 = vadd.f32 0.0, %v200
    %202 = vdwg.mxu0
    %v203 = vadd.f32 %v54, %v195
    %v204 = vadd.f32 %v55, %v197
    %v205 = vadd.f32 %v56, %v199
    %v206 = vadd.f32 %v57, %v201
    %207 = vst [vmem:[#allocation7] sm:$0xff] %v203
    %208 = vst [vmem:[#allocation7 + $0x8] sm:$0xff] %v204
    %209 = vst [vmem:[#allocation7 + $0x10] sm:$0xff] %v205
    %210 = vst [vmem:[#allocation7 + $0x18] sm:$0xff] %v206
    // Predicated region
    $region22: #{tpu_custom_call.1} parent=1 // pred_check
      _
    $region23: #{tpu_custom_call.1} parent=1 // pred_check_branch
      %212 = sbr.rel (0) target = $region25
    $region24: #{tpu_custom_call.1} parent=1 // pred_region
      %s214 = ssub.s32 512, 512
      %215 = vsyncadd [#allocation4], %s214
      %s216 = sshll.u32 [#allocation7], 4
      %s217 = int_to_ptr.vmem [resolvable:$true] %s216
      %222 = dma.vmem_to_hbm [thread:$0]  %s217, 512, %s2, [#allocation4], 256, 256, 16
    $region25: #{tpu_custom_call.1} parent=1 // pred_fallthru
      _
    // Predicated region
    $region26: #{tpu_custom_call.1} parent=1 // pred_check
      _
    $region27: #{tpu_custom_call.1} parent=1 // pred_check_branch
      %224 = sbr.rel (0) target = $region29
    $region28: #{tpu_custom_call.1} parent=1 // pred_region
      %225 = dma.done [#allocation4], 512
    $region29: #{tpu_custom_call.1} parent=1 // pred_fallthru
      _
    %226 = vsyncpa [#allocation3], 1
    %227 = vsyncpa [#allocation6], 1
    %228 = vsyncpa [#allocation4], 1

</llo_original>
